<compile_context>
chip_gen: v7x
topology: tpu7x:2x2x1
jax: 0.10.0
libtpu: 0.0.40
codegen_flags: <defaults>
</compile_context>

<pallas_src>
import jax
import jax.numpy as jnp
from jax.experimental import pallas as pl
from jax.experimental.pallas import tpu as pltpu


# --------------------------------------------------------------------------- #
# Kernels
# --------------------------------------------------------------------------- #
def _gaussian_fused_kernel(seed_ref, mu_ref, logvar_ref, z_ref):
    """eps drawn in-kernel from the TPU hardware PRNG; z = eps*std + mu."""
    # Mix base seed with the grid step -> distinct stream per block / per core.
    pltpu.prng_seed(seed_ref[0], pl.program_id(0))
    eps = pltpu.stateful_normal(z_ref.shape, jnp.float32)
    logvar = logvar_ref[...].astype(jnp.float32)
    std = jnp.clip(jnp.exp(0.5 * logvar), -3.0, 3.0)  # matches torch .clamp(-3, 3)
    z = eps * std + mu_ref[...].astype(jnp.float32)
    z_ref[...] = z.astype(z_ref.dtype)


def _gaussian_eps_kernel(mu_ref, logvar_ref, eps_ref, z_ref):
    """Verification path: eps streamed in from HBM (bit-checks the math)."""
    logvar = logvar_ref[...].astype(jnp.float32)
    std = jnp.clip(jnp.exp(0.5 * logvar), -3.0, 3.0)
    z = eps_ref[...].astype(jnp.float32) * std + mu_ref[...].astype(jnp.float32)
    z_ref[...] = z.astype(z_ref.dtype)


# --------------------------------------------------------------------------- #
# Layout / sizing helpers
# --------------------------------------------------------------------------- #
def _fused_block_bytes():
    """Generation-aware per-operand block size for the fused (3-operand) path."""
    try:
        kind = jax.devices()[0].device_kind.lower()
    except Exception:
        return 1 << 20
    if "v7" in kind:
        return 4 << 20   # 3 ops x 2 bufs x 4 MiB = 24 MiB < 32 MiB default scoped VMEM
    if "v6" in kind:
        return 2 << 20   # 12 MiB
    return 1 << 20       # v5e & unknown: 6 MiB < 16 MiB default scoped VMEM


_FUSED_BLOCK_BYTES = _fused_block_bytes()
_EPS_BLOCK_BYTES = 1 << 20     # 4 streamed operands x 2 bufs x 1 MiB = 8 MiB (safe on v5e)
_MIN_PALLAS_ELEMS = 8192       # below this, kernel-launch overhead dominates -> jnp


def _pick_layout(n, itemsize, target_block_bytes, min_grid_steps=8):
    """Lane-dense (rows, cols) view of n elements (n % 128 == 0, no padding copy).

    cols is the largest of {1024, 512, 256, 128} dividing n; block_rows is a
    multiple of 8 sized to ~target_block_bytes, shrunk if needed so the grid
    has >= min_grid_steps steps (feeds both v7x TensorCores).
    """
    cols = 128
    for c in (1024, 512, 256, 128):
        if n % c == 0:
            cols = c
            break
    rows = n // cols
    block_rows = max(8, target_block_bytes // (cols * itemsize))
    block_rows = (block_rows // 8) * 8
    block_rows = min(block_rows, rows)
    if rows >= min_grid_steps * 8:
        cap = -(-rows // min_grid_steps)      # ceil(rows / min_grid_steps)
        cap = ((cap + 7) // 8) * 8            # round up to a multiple of 8
        block_rows = min(block_rows, cap)
    block_rows = max(block_rows, 1)
    return rows, cols, block_rows


# --------------------------------------------------------------------------- #
# pallas_call wrappers
# --------------------------------------------------------------------------- #
def gaussian_sample_fused(mu, logvar, seed):
    """z = N(0,1)*clamp(exp(0.5*logvar),-3,3) + mu, eps drawn in-kernel.

    `seed` is an int32 array of shape (1,), prefetched into SMEM.
    Requires mu.size % 128 == 0 (callers route ragged/tiny tensors to jnp).
    """
    assert mu.shape == logvar.shape
    n = mu.size
    assert n % 128 == 0, "fused Pallas path requires a 128-aligned element count"
    orig_shape = mu.shape
    itemsize = jnp.dtype(mu.dtype).itemsize
    rows, cols, br = _pick_layout(n, itemsize, _FUSED_BLOCK_BYTES)

    mu2 = mu.reshape(rows, cols)        # contiguous reshape: no HBM copy
    lv2 = logvar.reshape(rows, cols)

    spec = pl.BlockSpec((br, cols), lambda i, seed_ref: (i, 0))
    z2 = pl.pallas_call(
        _gaussian_fused_kernel,
        out_shape=jax.ShapeDtypeStruct((rows, cols), mu.dtype),
        grid_spec=pltpu.PrefetchScalarGridSpec(
            num_scalar_prefetch=1,
            grid=(pl.cdiv(rows, br),),
            in_specs=[spec, spec],
            out_specs=spec,
        ),
        compiler_params=pltpu.CompilerParams(dimension_semantics=("parallel",)),
    )(seed, mu2, lv2)
    return z2.reshape(orig_shape)


def gaussian_sample_eps(mu, logvar, eps):
    """Same math with an explicitly supplied eps (verification only)."""
    assert mu.shape == logvar.shape == eps.shape
    n = mu.size
    assert n % 128 == 0, "eps Pallas path requires a 128-aligned element count"
    orig_shape = mu.shape
    itemsize = jnp.dtype(mu.dtype).itemsize
    rows, cols, br = _pick_layout(n, itemsize, _EPS_BLOCK_BYTES)

    mu2 = mu.reshape(rows, cols)
    lv2 = logvar.reshape(rows, cols)
    eps2 = eps.reshape(rows, cols)

    spec = pl.BlockSpec((br, cols), lambda i: (i, 0))
    z2 = pl.pallas_call(
        _gaussian_eps_kernel,
        out_shape=jax.ShapeDtypeStruct((rows, cols), mu.dtype),
        grid=(pl.cdiv(rows, br),),
        in_specs=[spec, spec, spec],
        out_specs=spec,
        compiler_params=pltpu.CompilerParams(dimension_semantics=("parallel",)),
    )(mu2, lv2, eps2)
    return z2.reshape(orig_shape)


# --------------------------------------------------------------------------- #
# Gaussian.forward equivalent
# --------------------------------------------------------------------------- #
def _sampling_jnp(mu, logvar, key):
    """XLA-fused fallback for tiny / ragged tensors (and no-HW-PRNG runtimes)."""
    std = jnp.clip(jnp.exp(0.5 * logvar.astype(jnp.float32)), -3.0, 3.0)
    eps = jax.random.normal(key, mu.shape, dtype=jnp.float32)
    return (eps * std + mu.astype(jnp.float32)).astype(mu.dtype)


def _sample_one(mu, logvar, key):
    n = mu.size
    if n < _MIN_PALLAS_ELEMS or n % 128 != 0:
        # TODO(synk): tiny or non-128-aligned tensors go through XLA-fused jnp
        # (launch overhead / pad-copy would dominate a Pallas dispatch here).
        return _sampling_jnp(mu, logvar, key)
    seed = jax.random.randint(key, (1,), 0, jnp.iinfo(jnp.int32).max, dtype=jnp.int32)
    return gaussian_sample_fused(mu, logvar, seed)


@jax.jit
def _forward_fused(mu_node, logvar_node, mu_edge, logvar_edge, key):
    # Seed/eps key derivation lives inside the jit -> no per-call host dispatches.
    k_node, k_edge = jax.random.split(key)
    z_node = _sample_one(mu_node, logvar_node, k_node)
    z_edge = _sample_one(mu_edge, logvar_edge, k_edge)
    return z_node, z_edge


@jax.jit
def _forward_jnp(mu_node, logvar_node, mu_edge, logvar_edge, key):
    k_node, k_edge = jax.random.split(key)
    return (_sampling_jnp(mu_node, logvar_node, k_node),
            _sampling_jnp(mu_edge, logvar_edge, k_edge))


_USE_FUSED = None  # resolved by a one-time probe on the first call


def gaussian_forward(mu_node, logvar_node, mu_edge, logvar_edge, key):
    """Equivalent of Gaussian.forward -> (z_node, z_edge)."""
    global _USE_FUSED
    if _USE_FUSED is None:
        # One-time capability probe (the ONLY call that forces a host sync).
        try:
            out = _forward_fused(mu_node, logvar_node, mu_edge, logvar_edge, key)
            jax.block_until_ready(out)
            _USE_FUSED = True
            return out
        except Exception:
            # TODO(synk): runtime lacks the in-kernel stateful PRNG; fall back
            # to the XLA-fused sampler (extra eps generation kernel).
            _USE_FUSED = False
    if _USE_FUSED:
        return _forward_fused(mu_node, logvar_node, mu_edge, logvar_edge, key)
    return _forward_jnp(mu_node, logvar_node, mu_edge, logvar_edge, key)


def _sampling_ref(mu, logvar, eps):
    std = jnp.clip(jnp.exp(0.5 * logvar), -3.0, 3.0)
    return eps * std + mu


# --------------------------------------------------------------------------- #
# Demo / self-check
# --------------------------------------------------------------------------- #
if __name__ == "__main__":
    # Graph-latent shapes: node (B, N, L); edge (B, N, N, L).
    batch, num_nodes, latent = 2, 16, 32
    key = jax.random.PRNGKey(0)
    k1, k2, k3, k4, k_eps, k_test, k_fwd2 = jax.random.split(key, 7)

    mu_node = jax.random.normal(k1, (batch, num_nodes, latent), dtype=jnp.float32)
    logvar_node = jax.random.normal(k2, (batch, num_nodes, latent), dtype=jnp.float32)
    mu_edge = jax.random.normal(k3, (batch, num_nodes, num_nodes, latent), dtype=jnp.float32)
    logvar_edge = jax.random.normal(k4, (batch, num_nodes, num_nodes, latent), dtype=jnp.float32)

    # (1) Bit-exact check of the elementwise math via the explicit-eps Pallas
    #     kernel (edge tensor is large enough & 128-aligned -> Pallas path).
    eps_e = jax.random.normal(k_test, mu_edge.shape, dtype=jnp.float32)
    z_e = gaussian_sample_eps(mu_edge, logvar_edge, eps_e)
    jax.block_until_ready(z_e)
    assert z_e.shape == mu_edge.shape
    assert jnp.allclose(z_e, _sampling_ref(mu_edge, logvar_edge, eps_e), atol=1e-5, rtol=1e-5)

    # (2) Full forward. Node latents (1024 elems) route to the XLA-fused path,
    #     edge latents (16384 elems) route to the fused in-kernel-PRNG Pallas
    #     kernel.  Second call exercises the no-sync fast path.
    z_node, z_edge = gaussian_forward(mu_node, logvar_node, mu_edge, logvar_edge, k_eps)
    jax.block_until_ready((z_node, z_edge))
    z_node2, z_edge2 = gaussian_forward(mu_node, logvar_node, mu_edge, logvar_edge, k_fwd2)
    jax.block_until_ready((z_node2, z_edge2))

    assert z_node.shape == mu_node.shape and z_edge.shape == mu_edge.shape
    assert bool(jnp.all(jnp.isfinite(z_node))) and bool(jnp.all(jnp.isfinite(z_edge)))
    assert bool(jnp.all(jnp.isfinite(z_node2))) and bool(jnp.all(jnp.isfinite(z_edge2)))

    # (3) Distributional check: standardized residuals should be ~N(0, 1).
    std_node = jnp.clip(jnp.exp(0.5 * logvar_node), -3.0, 3.0)
    std_edge = jnp.clip(jnp.exp(0.5 * logvar_edge), -3.0, 3.0)
    eps_hat = jnp.concatenate([((z_node - mu_node) / std_node).reshape(-1),
                               ((z_edge - mu_edge) / std_edge).reshape(-1)])
    # 17408 residuals; tolerances are many sigma wide.
    assert abs(float(jnp.mean(eps_hat))) < 0.2
    assert abs(float(jnp.std(eps_hat)) - 1.0) < 0.2

    print("KERNEL_OK")
</pallas_src>

<mosaic_0001>
module attributes {stable_mosaic.version = 11 : i64} {
  func.func @_gaussian_eps_kernel(%arg0: i32, %arg1: memref<16x1024xf32, #tpu.memory_space<vmem>>, %arg2: memref<16x1024xf32, #tpu.memory_space<vmem>>, %arg3: memref<16x1024xf32, #tpu.memory_space<vmem>>, %arg4: memref<16x1024xf32, #tpu.memory_space<vmem>>) attributes {dimension_semantics = [#tpu.dimension_semantics<parallel>], iteration_bounds = array<i64: 1>, scalar_prefetch = 0 : i64, scratch_operands = 0 : i64, tpu.core_type = #tpu.core_type<tc>, window_params = [{transform_indices = @transform_0, window_bounds = array<i64: 16, 1024>}, {transform_indices = @transform_1, window_bounds = array<i64: 16, 1024>}, {transform_indices = @transform_2, window_bounds = array<i64: 16, 1024>}, {transform_indices = @transform_3, window_bounds = array<i64: 16, 1024>}]} {
    %c0 = arith.constant 0 : index
    %c0_0 = arith.constant 0 : index
    %0 = vector.load %arg2[%c0, %c0_0] : memref<16x1024xf32, #tpu.memory_space<vmem>>, vector<16x1024xf32>
    %cst = arith.constant 5.000000e-01 : f32
    %1 = vector.broadcast %cst : f32 to vector<16x1024xf32>
    %2 = arith.mulf %1, %0 : vector<16x1024xf32>
    %3 = math.exp %2 : vector<16x1024xf32>
    %cst_1 = arith.constant -3.000000e+00 : f32
    %cst_2 = arith.constant 3.000000e+00 : f32
    %4 = vector.broadcast %cst_1 : f32 to vector<16x1024xf32>
    %5 = arith.maximumf %4, %3 : vector<16x1024xf32>
    %6 = vector.broadcast %cst_2 : f32 to vector<16x1024xf32>
    %7 = arith.minimumf %6, %5 : vector<16x1024xf32>
    %c0_3 = arith.constant 0 : index
    %c0_4 = arith.constant 0 : index
    %8 = vector.load %arg3[%c0_3, %c0_4] : memref<16x1024xf32, #tpu.memory_space<vmem>>, vector<16x1024xf32>
    %9 = arith.mulf %8, %7 : vector<16x1024xf32>
    %c0_5 = arith.constant 0 : index
    %c0_6 = arith.constant 0 : index
    %10 = vector.load %arg1[%c0_5, %c0_6] : memref<16x1024xf32, #tpu.memory_space<vmem>>, vector<16x1024xf32>
    %11 = arith.addf %9, %10 : vector<16x1024xf32>
    %c0_7 = arith.constant 0 : index
    %c0_8 = arith.constant 0 : index
    %12 = vector.load %arg4[%c0_7, %c0_8] : memref<16x1024xf32, #tpu.memory_space<vmem>>, vector<16x1024xf32>
    tpu.vector_store %arg4[%c0_7, %c0_8], %11 {strides = array<i32>} : memref<16x1024xf32, #tpu.memory_space<vmem>>, vector<16x1024xf32>,
    return
  }
  func.func @transform_0(%arg0: i32) -> (i32, i32) {
    %c0_i32 = arith.constant 0 : i32
    %c0_i32_0 = arith.constant 0 : i32
    return %arg0, %c0_i32 : i32, i32
  }
  func.func @transform_1(%arg0: i32) -> (i32, i32) {
    %c0_i32 = arith.constant 0 : i32
    %c0_i32_0 = arith.constant 0 : i32
    return %arg0, %c0_i32 : i32, i32
  }
  func.func @transform_2(%arg0: i32) -> (i32, i32) {
    %c0_i32 = arith.constant 0 : i32
    %c0_i32_0 = arith.constant 0 : i32
    return %arg0, %c0_i32 : i32, i32
  }
  func.func @transform_3(%arg0: i32) -> (i32, i32) {
    %c0_i32 = arith.constant 0 : i32
    %c0_i32_0 = arith.constant 0 : i32
    return %arg0, %c0_i32 : i32, i32
  }
}

</mosaic_0001>

<llo_original>
// kernel: tpu_custom_call.1
$region0: #{tpu_custom_call.1}
  #allocation0 [shape = 'u32[]', space=smem, size = 0x4, offset = 0x4, fixed_abs, tag = 'smem constant byte address 0x4 - core index']
  #allocation1 [shape = 'u32[144,128]{1,0:T(1,128)}', space=vmem, size = 0x12000, scoped, tag = 'internal scratch']
  %s0 = inlined_call_operand.hbm [shape: f32[16,1024], index: 0, kind: input, shape index: {}]
  %s1 = inlined_call_operand.hbm [shape: f32[16,1024], index: 1, kind: input, shape index: {}]
  %s2 = inlined_call_operand.hbm [shape: f32[16,1024], index: 2, kind: input, shape index: {}]
  %s3 = inlined_call_operand.hbm [shape: f32[16,1024], index: 3, kind: output, shape index: {}]
  %s4 = sld [smem:[#allocation0]]
  $region34: #{tpu_custom_call.1} parent=0
    _
  %s6 = ssub.s32 1, %s4
  %s7 = scalar_select 0, %s6, %s4
  $region1: #{tpu_custom_call.1} parent=0
    #allocation2 [shape = 'u8[65536]{0}', space=vmem, size = 0x10000, scoped, tag = 'input window, operand 0, single buffered']
    #allocation3 [shape = 's32[1]{0}', space=sflag, size = 0x4, scoped, tag = 'scoped memory for tpu_custom_call.1']
    #allocation4 [shape = 's32[1]{0}', space=sflag, size = 0x4, scoped, tag = 'scoped memory for tpu_custom_call.1']
    #allocation5 [shape = 'u8[65536]{0}', space=vmem, size = 0x10000, scoped, tag = 'input window, operand 1, single buffered']
    #allocation6 [shape = 's32[1]{0}', space=sflag, size = 0x4, scoped, tag = 'scoped memory for tpu_custom_call.1']
    #allocation7 [shape = 'u8[65536]{0}', space=vmem, size = 0x10000, scoped, tag = 'input window, operand 2, single buffered']
    #allocation8 [shape = 'u8[65536]{0}', space=vmem, size = 0x10000, scoped, tag = 'output window, operand 0, single buffered']
    %8 = vsyncpa [#allocation3], 0
    %9 = vsyncpa [#allocation6], 0
    %10 = vsyncpa [#allocation4], 0
    // Predicated region
    $region2: #{tpu_custom_call.1} parent=1 // pred_check
      _
    $region3: #{tpu_custom_call.1} parent=1 // pred_check_branch
      %12 = sbr.rel (0) target = $region5
    $region4: #{tpu_custom_call.1} parent=1 // pred_region
      %s14 = ssub.s32 2048, 2048
      %15 = vsyncadd [#allocation3], %s14
      %s16 = sshll.u32 [#allocation2], 4
      %s17 = int_to_ptr.vmem [resolvable:$true] %s16
      %22 = dma.hbm_to_vmem [thread:$0]  %s0, 2048, %s17, [#allocation3], 1024, 1024, 64
    $region5: #{tpu_custom_call.1} parent=1 // pred_fallthru
      _
    // Predicated region
    $region6: #{tpu_custom_call.1} parent=1 // pred_check
      _
    $region7: #{tpu_custom_call.1} parent=1 // pred_check_branch
      %24 = sbr.rel (0) target = $region9
    $region8: #{tpu_custom_call.1} parent=1 // pred_region
      %s26 = ssub.s32 2048, 2048
      %27 = vsyncadd [#allocation6], %s26
      %s28 = sshll.u32 [#allocation5], 4
      %s29 = int_to_ptr.vmem [resolvable:$true] %s28
      %34 = dma.hbm_to_vmem [thread:$0]  %s1, 2048, %s29, [#allocation6], 1024, 1024, 64
    $region9: #{tpu_custom_call.1} parent=1 // pred_fallthru
      _
    // Predicated region
    $region10: #{tpu_custom_call.1} parent=1 // pred_check
      _
    $region11: #{tpu_custom_call.1} parent=1 // pred_check_branch
      %36 = sbr.rel (0) target = $region13
    $region12: #{tpu_custom_call.1} parent=1 // pred_region
      %s38 = ssub.s32 2048, 2048
      %39 = vsyncadd [#allocation6], %s38
      %s40 = sshll.u32 [#allocation7], 4
      %s41 = int_to_ptr.vmem [resolvable:$true] %s40
      %46 = dma.hbm_to_vmem [thread:$0]  %s2, 2048, %s41, [#allocation6], 1024, 1024, 64
    $region13: #{tpu_custom_call.1} parent=1 // pred_fallthru
      _
    // Predicated region
    $region14: #{tpu_custom_call.1} parent=1 // pred_check
      _
    $region15: #{tpu_custom_call.1} parent=1 // pred_check_branch
      %48 = sbr.rel (0) target = $region17
    $region16: #{tpu_custom_call.1} parent=1 // pred_region
      %49 = dma.done [#allocation3], 2048
    $region17: #{tpu_custom_call.1} parent=1 // pred_fallthru
      _
    // Predicated region
    $region18: #{tpu_custom_call.1} parent=1 // pred_check
      _
    $region19: #{tpu_custom_call.1} parent=1 // pred_check_branch
      %51 = sbr.rel (0) target = $region21
    $region20: #{tpu_custom_call.1} parent=1 // pred_region
      %52 = dma.done [#allocation6], 2048
    $region21: #{tpu_custom_call.1} parent=1 // pred_fallthru
      _
    // Predicated region
    $region22: #{tpu_custom_call.1} parent=1 // pred_check
      _
    $region23: #{tpu_custom_call.1} parent=1 // pred_check_branch
      %54 = sbr.rel (0) target = $region25
    $region24: #{tpu_custom_call.1} parent=1 // pred_region
      %55 = dma.done [#allocation6], 2048
    $region25: #{tpu_custom_call.1} parent=1 // pred_fallthru
      _
    %v56 = vld [vmem:[#allocation5] sm:$0xff]
    %v57 = vld [vmem:[#allocation5 + $0x8] sm:$0xff]
    %v58 = vld [vmem:[#allocation5 + $0x10] sm:$0xff]
    %v59 = vld [vmem:[#allocation5 + $0x18] sm:$0xff]
    %v60 = vld [vmem:[#allocation5 + $0x20] sm:$0xff]
    %v61 = vld [vmem:[#allocation5 + $0x28] sm:$0xff]
    %v62 = vld [vmem:[#allocation5 + $0x30] sm:$0xff]
    %v63 = vld [vmem:[#allocation5 + $0x38] sm:$0xff]
    %v64 = vld [vmem:[#allocation5 + $0x40] sm:$0xff]
    %v65 = vld [vmem:[#allocation5 + $0x48] sm:$0xff]
    %v66 = vld [vmem:[#allocation5 + $0x50] sm:$0xff]
    %v67 = vld [vmem:[#allocation5 + $0x58] sm:$0xff]
    %v68 = vld [vmem:[#allocation5 + $0x60] sm:$0xff]
    %v69 = vld [vmem:[#allocation5 + $0x68] sm:$0xff]
    %v70 = vld [vmem:[#allocation5 + $0x70] sm:$0xff]
    %v71 = vld [vmem:[#allocation5 + $0x78] sm:$0xff]
    %v72 = vmul.f32 %v56, 0.5
    %v73 = vmul.f32 %v57, 0.5
    %v74 = vmul.f32 %v58, 0.5
    %v75 = vmul.f32 %v59, 0.5
    %v76 = vmul.f32 %v60, 0.5
    %v77 = vmul.f32 %v61, 0.5
    %v78 = vmul.f32 %v62, 0.5
    %v79 = vmul.f32 %v63, 0.5
    %v80 = vmul.f32 %v64, 0.5
    %v81 = vmul.f32 %v65, 0.5
    %v82 = vmul.f32 %v66, 0.5
    %v83 = vmul.f32 %v67, 0.5
    %v84 = vmul.f32 %v68, 0.5
    %v85 = vmul.f32 %v69, 0.5
    %v86 = vmul.f32 %v70, 0.5
    %v87 = vmul.f32 %v71, 0.5
    %v88 = vmul.f32 %v72, 1.442695
    %v89 = vpow.pop %v88
    %v90 = vmul.f32 %v73, 1.442695
    %v91 = vpow.pop %v90
    %v92 = vmul.f32 %v74, 1.442695
    %v93 = vpow.pop %v92
    %v94 = vmul.f32 %v75, 1.442695
    %v95 = vpow.pop %v94
    %v96 = vmul.f32 %v76, 1.442695
    %v97 = vpow.pop %v96
    %v98 = vmul.f32 %v77, 1.442695
    %v99 = vpow.pop %v98
    %v100 = vmul.f32 %v78, 1.442695
    %v101 = vpow.pop %v100
    %v102 = vmul.f32 %v79, 1.442695
    %v103 = vpow.pop %v102
    %v104 = vmul.f32 %v80, 1.442695
    %v105 = vpow.pop %v104
    %v106 = vmul.f32 %v81, 1.442695
    %v107 = vpow.pop %v106
    %v108 = vmul.f32 %v82, 1.442695
    %v109 = vpow.pop %v108
    %v110 = vmul.f32 %v83, 1.442695
    %v111 = vpow.pop %v110
    %v112 = vmul.f32 %v84, 1.442695
    %v113 = vpow.pop %v112
    %v114 = vmul.f32 %v85, 1.442695
    %v115 = vpow.pop %v114
    %v116 = vmul.f32 %v86, 1.442695
    %v117 = vpow.pop %v116
    %v118 = vmul.f32 %v87, 1.442695
    %v119 = vpow.pop %v118
    %v120 = vmax.f32 %v89, -3.0
    %v121 = vmax.f32 %v91, -3.0
    %v122 = vmax.f32 %v93, -3.0
    %v123 = vmax.f32 %v95, -3.0
    %v124 = vmax.f32 %v97, -3.0
    %v125 = vmax.f32 %v99, -3.0
    %v126 = vmax.f32 %v101, -3.0
    %v127 = vmax.f32 %v103, -3.0
    %v128 = vmax.f32 %v105, -3.0
    %v129 = vmax.f32 %v107, -3.0
    %v130 = vmax.f32 %v109, -3.0
    %v131 = vmax.f32 %v111, -3.0
    %v132 = vmax.f32 %v113, -3.0
    %v133 = vmax.f32 %v115, -3.0
    %v134 = vmax.f32 %v117, -3.0
    %v135 = vmax.f32 %v119, -3.0
    %v136 = vmin.f32 %v120, 3.0
    %v137 = vmin.f32 %v121, 3.0
    %v138 = vmin.f32 %v122, 3.0
    %v139 = vmin.f32 %v123, 3.0
    %v140 = vmin.f32 %v124, 3.0
    %v141 = vmin.f32 %v125, 3.0
    %v142 = vmin.f32 %v126, 3.0
    %v143 = vmin.f32 %v127, 3.0
    %v144 = vmin.f32 %v128, 3.0
    %v145 = vmin.f32 %v129, 3.0
    %v146 = vmin.f32 %v130, 3.0
    %v147 = vmin.f32 %v131, 3.0
    %v148 = vmin.f32 %v132, 3.0
    %v149 = vmin.f32 %v133, 3.0
    %v150 = vmin.f32 %v134, 3.0
    %v151 = vmin.f32 %v135, 3.0
    %v152 = vld [vmem:[#allocation7] sm:$0xff]
    %v153 = vld [vmem:[#allocation7 + $0x8] sm:$0xff]
    %v154 = vld [vmem:[#allocation7 + $0x10] sm:$0xff]
    %v155 = vld [vmem:[#allocation7 + $0x18] sm:$0xff]
    %v156 = vld [vmem:[#allocation7 + $0x20] sm:$0xff]
    %v157 = vld [vmem:[#allocation7 + $0x28] sm:$0xff]
    %v158 = vld [vmem:[#allocation7 + $0x30] sm:$0xff]
    %v159 = vld [vmem:[#allocation7 + $0x38] sm:$0xff]
    %v160 = vld [vmem:[#allocation7 + $0x40] sm:$0xff]
    %v161 = vld [vmem:[#allocation7 + $0x48] sm:$0xff]
    %v162 = vld [vmem:[#allocation7 + $0x50] sm:$0xff]
    %v163 = vld [vmem:[#allocation7 + $0x58] sm:$0xff]
    %v164 = vld [vmem:[#allocation7 + $0x60] sm:$0xff]
    %v165 = vld [vmem:[#allocation7 + $0x68] sm:$0xff]
    %v166 = vld [vmem:[#allocation7 + $0x70] sm:$0xff]
    %v167 = vld [vmem:[#allocation7 + $0x78] sm:$0xff]
    %v168 = vmul.f32 %v152, %v136
    %v169 = vmul.f32 %v153, %v137
    %v170 = vmul.f32 %v154, %v138
    %v171 = vmul.f32 %v155, %v139
    %v172 = vmul.f32 %v156, %v140
    %v173 = vmul.f32 %v157, %v141
    %v174 = vmul.f32 %v158, %v142
    %v175 = vmul.f32 %v159, %v143
    %v176 = vmul.f32 %v160, %v144
    %v177 = vmul.f32 %v161, %v145
    %v178 = vmul.f32 %v162, %v146
    %v179 = vmul.f32 %v163, %v147
    %v180 = vmul.f32 %v164, %v148
    %v181 = vmul.f32 %v165, %v149
    %v182 = vmul.f32 %v166, %v150
    %v183 = vmul.f32 %v167, %v151
    %v184 = vld [vmem:[#allocation2] sm:$0xff]
    %v185 = vld [vmem:[#allocation2 + $0x8] sm:$0xff]
    %v186 = vld [vmem:[#allocation2 + $0x10] sm:$0xff]
    %v187 = vld [vmem:[#allocation2 + $0x18] sm:$0xff]
    %v188 = vld [vmem:[#allocation2 + $0x20] sm:$0xff]
    %v189 = vld [vmem:[#allocation2 + $0x28] sm:$0xff]
    %v190 = vld [vmem:[#allocation2 + $0x30] sm:$0xff]
    %v191 = vld [vmem:[#allocation2 + $0x38] sm:$0xff]
    %v192 = vld [vmem:[#allocation2 + $0x40] sm:$0xff]
    %v193 = vld [vmem:[#allocation2 + $0x48] sm:$0xff]
    %v194 = vld [vmem:[#allocation2 + $0x50] sm:$0xff]
    %v195 = vld [vmem:[#allocation2 + $0x58] sm:$0xff]
    %v196 = vld [vmem:[#allocation2 + $0x60] sm:$0xff]
    %v197 = vld [vmem:[#allocation2 + $0x68] sm:$0xff]
    %v198 = vld [vmem:[#allocation2 + $0x70] sm:$0xff]
    %v199 = vld [vmem:[#allocation2 + $0x78] sm:$0xff]
    %v200 = vadd.f32 %v168, %v184
    %v201 = vadd.f32 %v169, %v185
    %v202 = vadd.f32 %v170, %v186
    %v203 = vadd.f32 %v171, %v187
    %v204 = vadd.f32 %v172, %v188
    %v205 = vadd.f32 %v173, %v189
    %v206 = vadd.f32 %v174, %v190
    %v207 = vadd.f32 %v175, %v191
    %v208 = vadd.f32 %v176, %v192
    %v209 = vadd.f32 %v177, %v193
    %v210 = vadd.f32 %v178, %v194
    %v211 = vadd.f32 %v179, %v195
    %v212 = vadd.f32 %v180, %v196
    %v213 = vadd.f32 %v181, %v197
    %v214 = vadd.f32 %v182, %v198
    %v215 = vadd.f32 %v183, %v199
    %216 = vst [vmem:[#allocation8] sm:$0xff] %v200
    %217 = vst [vmem:[#allocation8 + $0x8] sm:$0xff] %v201
    %218 = vst [vmem:[#allocation8 + $0x10] sm:$0xff] %v202
    %219 = vst [vmem:[#allocation8 + $0x18] sm:$0xff] %v203
    %220 = vst [vmem:[#allocation8 + $0x20] sm:$0xff] %v204
    %221 = vst [vmem:[#allocation8 + $0x28] sm:$0xff] %v205
    %222 = vst [vmem:[#allocation8 + $0x30] sm:$0xff] %v206
    %223 = vst [vmem:[#allocation8 + $0x38] sm:$0xff] %v207
    %224 = vst [vmem:[#allocation8 + $0x40] sm:$0xff] %v208
    %225 = vst [vmem:[#allocation8 + $0x48] sm:$0xff] %v209
    %226 = vst [vmem:[#allocation8 + $0x50] sm:$0xff] %v210
    %227 = vst [vmem:[#allocation8 + $0x58] sm:$0xff] %v211
    %228 = vst [vmem:[#allocation8 + $0x60] sm:$0xff] %v212
    %229 = vst [vmem:[#allocation8 + $0x68] sm:$0xff] %v213
    %230 = vst [vmem:[#allocation8 + $0x70] sm:$0xff] %v214
    %231 = vst [vmem:[#allocation8 + $0x78] sm:$0xff] %v215
    // Predicated region
    $region26: #{tpu_custom_call.1} parent=1 // pred_check
      _
    $region27: #{tpu_custom_call.1} parent=1 // pred_check_branch
      %233 = sbr.rel (0) target = $region29
    $region28: #{tpu_custom_call.1} parent=1 // pred_region
      %s235 = ssub.s32 2048, 2048
      %236 = vsyncadd [#allocation4], %s235
      %s237 = sshll.u32 [#allocation8], 4
      %s238 = int_to_ptr.vmem [resolvable:$true] %s237
      %243 = dma.vmem_to_hbm [thread:$0]  %s238, 2048, %s3, [#allocation4], 1024, 1024, 64
    $region29: #{tpu_custom_call.1} parent=1 // pred_fallthru
      _
    // Predicated region
    $region30: #{tpu_custom_call.1} parent=1 // pred_check
      _
    $region31: #{tpu_custom_call.1} parent=1 // pred_check_branch
      %245 = sbr.rel (0) target = $region33
    $region32: #{tpu_custom_call.1} parent=1 // pred_region
      %246 = dma.done [#allocation4], 2048
    $region33: #{tpu_custom_call.1} parent=1 // pred_fallthru
      _
    %247 = vsyncpa [#allocation3], 1
    %248 = vsyncpa [#allocation6], 1
    %249 = vsyncpa [#allocation4], 1

</llo_original>
